<compile_context>
chip_gen: v6e
topology: v6e:2x2x1
jax: 0.10.0
libtpu: 0.0.40
codegen_flags: <defaults>
</compile_context>

<pallas_src>
import functools

import jax
import jax.numpy as jnp
from jax import lax
from jax.experimental import pallas as pl
from jax.experimental.pallas import tpu as pltpu


_LANE = 128
_SUBLANE = 8
_VMEM_LIMIT_BYTES = 48 * 1024 * 1024    # raise the scoped-VMEM default (16/32 MiB)
_WORKING_SET_BUDGET = 28 * 1024 * 1024  # ~7 MiB x-tile + ~7 MiB out-tile, double-buffered
_UNROLL = 4                             # bounded unroll of the in-kernel batch loop


def _round_up(n, m):
    return ((n + m - 1) // m) * m


def _conv1d_tanh_kernel(x_ref, w_ref, b_ref, o_ref, *, k_taps, compute_dtype, unroll):
    """x_ref: (bb, C_in_p, T_pad); w_ref: (C_out_p, K*C_in_p); b_ref: (C_out_p, 1) f32;
    o_ref: (bb, C_out_p, T_out_pad)."""
    bb = x_ref.shape[0]
    c_out, t_out = o_ref.shape[1], o_ref.shape[2]

    # Hoisted out of the batch loop: one weight cast + one bias broadcast per
    # grid step (JAX does not CSE broadcast_in_dim / convert inside the loop).
    w_mat = w_ref[...].astype(compute_dtype)              # (C_out_p, K*C_in_p)
    bias = jnp.broadcast_to(b_ref[...], (c_out, t_out))   # f32, (C_out_p, T_out_pad)

    def body(bi, carry):
        xb = x_ref[bi].astype(jnp.float32)                # (C_in_p, T_pad)
        # Fold the K taps into the contraction: stack the K shifted windows into
        # a single (K*C_in_p, T_out_pad) slab (concat along a tile-aligned
        # sublane axis), then ONE MXU matmul per batch with f32 accumulation.
        slab = jnp.concatenate(
            [xb[:, k:k + t_out] for k in range(k_taps)], axis=0
        ).astype(compute_dtype)
        acc = jnp.dot(w_mat, slab, preferred_element_type=jnp.float32)
        # Bias + tanh stay in f32 (VPU/EUP); lane-dense store (T_out_pad % 128 == 0).
        o_ref[bi] = jnp.tanh(acc + bias).astype(o_ref.dtype)
        return carry

    lax.fori_loop(0, bb, body, 0, unroll=min(unroll, bb))


def _pick_block_b(batch, c_in_p, c_out_p, k, t_pad, t_out_p, itemsize):
    """Batches per grid step, budgeting the full double-buffered working set."""
    x_tile = c_in_p * t_pad * itemsize
    o_tile = c_out_p * t_out_p * itemsize
    per_batch = 2 * (x_tile + o_tile)                     # double-buffered in/out tiles
    fixed = 2 * (c_out_p * k * c_in_p + c_out_p) * 4      # resident weights + bias
    temps = _UNROLL * (k * c_in_p * t_out_p * 6           # f32 concat + bf16 slab
                       + c_in_p * t_pad * 4               # f32 batch row
                       + 2 * c_out_p * t_out_p * 4)       # f32 acc + epilogue temp
    avail = max(_WORKING_SET_BUDGET - fixed - temps, per_batch)
    bb = max(1, min(batch, avail // per_batch))
    if batch >= 2:
        bb = max(1, min(bb, batch // 2))   # >= 2 grid steps: feed both v7x TensorCores
    while batch % bb:                      # bb must evenly divide B (full blocks only)
        bb -= 1
    return bb


def conv1d_tanh(x, w, b, *, block_b=None, compute_dtype=jnp.bfloat16):
    """x: (B, C_in, T); w: (C_out, C_in, K) (PyTorch Conv1d weight layout);
    b: (C_out,).  Returns tanh(conv1d(x, w) + b): (B, C_out, T - K + 1).

    Matmuls run in `compute_dtype` (bf16 by default: MXU-native on v6e/v7x)
    with f32 accumulation; pass jnp.float32 for exact math."""
    B, C_in, T = x.shape
    C_out, C_in_w, K = w.shape
    assert C_in_w == C_in, "weight/input channel mismatch"
    T_out = T - K + 1
    assert T_out >= 1, "kernel_size larger than temporal length"

    # Padded geometry: lane-dense output stores (T_out -> %128), (8,128)-aligned tiles.
    T_out_p = _round_up(T_out, _LANE)
    T_pad = T_out_p + K - 1                  # >= T; zero time-padding, sliced off below
    C_in_p = _round_up(C_in, _SUBLANE)
    C_out_p = _round_up(C_out, _SUBLANE)

    x_p = x
    if (C_in_p, T_pad) != (C_in, T):
        x_p = jnp.pad(x, ((0, 0), (0, C_in_p - C_in), (0, T_pad - T)))

    # Weight flattened for the K-folded contraction: w_flat[o, k*C_in_p + i] = w[o, i, k].
    w_p = jnp.zeros((C_out_p, C_in_p, K), w.dtype).at[:C_out, :C_in, :].set(w)
    w_flat = jnp.transpose(w_p, (0, 2, 1)).reshape(C_out_p, K * C_in_p)
    b_p = jnp.zeros((C_out_p, 1), jnp.float32).at[:C_out, 0].set(b.astype(jnp.float32))

    bb = (_pick_block_b(B, C_in_p, C_out_p, K, T_pad, T_out_p, x.dtype.itemsize)
          if block_b is None else block_b)
    assert B % bb == 0

    kernel = functools.partial(_conv1d_tanh_kernel, k_taps=K,
                               compute_dtype=compute_dtype, unroll=_UNROLL)

    out_p = pl.pallas_call(
        kernel,
        out_shape=jax.ShapeDtypeStruct((B, C_out_p, T_out_p), x.dtype),
        grid_spec=pltpu.PrefetchScalarGridSpec(
            num_scalar_prefetch=0,
            grid=(B // bb,),
            in_specs=[
                pl.BlockSpec((bb, C_in_p, T_pad), lambda i: (i, 0, 0)),        # x block
                pl.BlockSpec((C_out_p, K * C_in_p), lambda i: (0, 0)),         # weights (resident)
                pl.BlockSpec((C_out_p, 1), lambda i: (0, 0)),                  # bias (resident)
            ],
            out_specs=pl.BlockSpec((bb, C_out_p, T_out_p), lambda i: (i, 0, 0)),
        ),
        compiler_params=pltpu.CompilerParams(
            dimension_semantics=("parallel",),
            vmem_limit_bytes=_VMEM_LIMIT_BYTES,
        ),
    )(x_p, w_flat, b_p)

    return out_p[:, :C_out, :T_out]


def _reference(x, w, b):
    """Pure-JAX reference of the PyTorch forward (exact f32 VPU math)."""
    B, C_in, T = x.shape
    C_out, _, K = w.shape
    T_out = T - K + 1
    xf = x.astype(jnp.float32)
    wf = w.astype(jnp.float32)
    acc = jnp.zeros((B, C_out, T_out), jnp.float32)
    for k in range(K):
        acc = acc + jnp.sum(
            xf[:, None, :, k:k + T_out] * wf[None, :, :, k, None], axis=2)
    return jnp.tanh(acc + b[None, :, None].astype(jnp.float32)).astype(x.dtype)


if __name__ == "__main__":
    key = jax.random.PRNGKey(0)
    k1, k2, k3, k4, k5, k6 = jax.random.split(key, 6)

    # Case 1: small shapes consistent with the module (NCL input, kernel_size=3).
    B, C_in, C_out, T, K = 2, 4, 8, 16, 3
    x = jax.random.normal(k1, (B, C_in, T), dtype=jnp.float32)
    w = 0.1 * jax.random.normal(k2, (C_out, C_in, K), dtype=jnp.float32)   # Conv1d weight
    b = 0.1 * jax.random.normal(k3, (C_out,), dtype=jnp.float32)           # Conv1d bias
    y = jax.block_until_ready(conv1d_tanh(x, w, b))
    y_ref = _reference(x, w, b)
    assert y.shape == (B, C_out, T - K + 1)
    err = float(jnp.max(jnp.abs(y - y_ref)))
    assert err < 3e-2, err   # bf16 MXU inputs, f32 accumulation / epilogue

    # Case 2: exercises bb > 1, the bounded-unroll batch loop, and channel padding.
    B2, Ci2, Co2, T2, K2 = 8, 6, 10, 40, 5
    x2 = jax.random.normal(k4, (B2, Ci2, T2), dtype=jnp.float32)
    w2 = 0.05 * jax.random.normal(k5, (Co2, Ci2, K2), dtype=jnp.float32)
    b2 = 0.1 * jax.random.normal(k6, (Co2,), dtype=jnp.float32)
    y2 = jax.block_until_ready(conv1d_tanh(x2, w2, b2))
    y2_ref = _reference(x2, w2, b2)
    assert y2.shape == (B2, Co2, T2 - K2 + 1)
    err2 = float(jnp.max(jnp.abs(y2 - y2_ref)))
    assert err2 < 3e-2, err2

    print("KERNEL_OK")
</pallas_src>

<mosaic_0001>
module attributes {stable_mosaic.version = 11 : i64} {
  func.func @_conv1d_tanh_kernel(%arg0: i32, %arg1: memref<1x8x130xf32, #tpu.memory_space<vmem>>, %arg2: memref<8x24xf32, #tpu.memory_space<vmem>>, %arg3: memref<8x1xf32, #tpu.memory_space<vmem>>, %arg4: memref<1x8x128xf32, #tpu.memory_space<vmem>>) attributes {dimension_semantics = [#tpu.dimension_semantics<parallel>], iteration_bounds = array<i64: 2>, scalar_prefetch = 0 : i64, scratch_operands = 0 : i64, tpu.core_type = #tpu.core_type<tc>, window_params = [{transform_indices = @transform_0, window_bounds = array<i64: 1, 8, 130>}, {pipeline_mode = #tpu.pipeline_mode<synchronous>, transform_indices = @transform_1, window_bounds = array<i64: 8, 24>}, {pipeline_mode = #tpu.pipeline_mode<synchronous>, transform_indices = @transform_2, window_bounds = array<i64: 8, 1>}, {transform_indices = @transform_3, window_bounds = array<i64: 1, 8, 128>}]} {
    %c0 = arith.constant 0 : index
    %c0_0 = arith.constant 0 : index
    %0 = vector.load %arg2[%c0, %c0_0] : memref<8x24xf32, #tpu.memory_space<vmem>>, vector<8x24xf32>
    %1 = arith.truncf %0 : vector<8x24xf32> to vector<8x24xbf16>
    %c0_1 = arith.constant 0 : index
    %c0_2 = arith.constant 0 : index
    %2 = vector.load %arg3[%c0_1, %c0_2] : memref<8x1xf32, #tpu.memory_space<vmem>>, vector<8x1xf32>
    %3 = vector.shape_cast %2 : vector<8x1xf32> to vector<8x1xf32>
    %4 = vector.broadcast %3 : vector<8x1xf32> to vector<8x128xf32>
    %c0_i32 = arith.constant 0 : i32
    %5 = arith.index_cast %c0_i32 : i32 to index
    %c0_3 = arith.constant 0 : index
    %c0_4 = arith.constant 0 : index
    %6 = vector.load %arg1[%5, %c0_3, %c0_4] : memref<1x8x130xf32, #tpu.memory_space<vmem>>, vector<1x8x130xf32>
    %7 = vector.shape_cast %6 : vector<1x8x130xf32> to vector<8x130xf32>
    %8 = vector.extract_strided_slice %7 {offsets = [0, 0], sizes = [8, 128], strides = [1, 1]} : vector<8x130xf32> to vector<8x128xf32>
    %9 = vector.extract_strided_slice %7 {offsets = [0, 1], sizes = [8, 128], strides = [1, 1]} : vector<8x130xf32> to vector<8x128xf32>
    %10 = vector.extract_strided_slice %7 {offsets = [0, 2], sizes = [8, 128], strides = [1, 1]} : vector<8x130xf32> to vector<8x128xf32>
    %11 = tpu.concatenate %8, %9, %10 in 0 : vector<8x128xf32>, vector<8x128xf32>, vector<8x128xf32> -> vector<24x128xf32>
    %12 = arith.truncf %11 : vector<24x128xf32> to vector<24x128xbf16>
    %cst = arith.constant dense<0.000000e+00> : vector<8x128xf32>
    %13 = tpu.matmul %1, %12, %cst {dimension_numbers = #tpu.dot_dimension_numbers<[1], [0], [0], [1], [0, 0, 1, 1], [], []>} : vector<8x24xbf16>, vector<24x128xbf16>, vector<8x128xf32> -> vector<8x128xf32>
    %14 = arith.addf %13, %4 : vector<8x128xf32>
    %15 = math.tanh %14 : vector<8x128xf32>
    %16 = arith.index_cast %c0_i32 : i32 to index
    %c0_5 = arith.constant 0 : index
    %c0_6 = arith.constant 0 : index
    %17 = vector.load %arg4[%16, %c0_5, %c0_6] : memref<1x8x128xf32, #tpu.memory_space<vmem>>, vector<1x8x128xf32>
    %18 = vector.shape_cast %17 : vector<1x8x128xf32> to vector<8x128xf32>
    %19 = vector.shape_cast %15 : vector<8x128xf32> to vector<1x8x128xf32>
    tpu.vector_store %arg4[%16, %c0_5, %c0_6], %19 {strides = array<i32>} : memref<1x8x128xf32, #tpu.memory_space<vmem>>, vector<1x8x128xf32>,
    %c1_i32 = arith.constant 1 : i32
    return
  }
  func.func @transform_0(%arg0: i32) -> (i32, i32, i32) {
    %c0_i32 = arith.constant 0 : i32
    %c0_i32_0 = arith.constant 0 : i32
    %c0_i32_1 = arith.constant 0 : i32
    return %arg0, %c0_i32, %c0_i32_0 : i32, i32, i32
  }
  func.func @transform_1(%arg0: i32) -> (i32, i32) {
    %c0_i32 = arith.constant 0 : i32
    %c0_i32_0 = arith.constant 0 : i32
    %c0_i32_1 = arith.constant 0 : i32
    return %c0_i32, %c0_i32_0 : i32, i32
  }
  func.func @transform_2(%arg0: i32) -> (i32, i32) {
    %c0_i32 = arith.constant 0 : i32
    %c0_i32_0 = arith.constant 0 : i32
    %c0_i32_1 = arith.constant 0 : i32
    return %c0_i32, %c0_i32_0 : i32, i32
  }
  func.func @transform_3(%arg0: i32) -> (i32, i32, i32) {
    %c0_i32 = arith.constant 0 : i32
    %c0_i32_0 = arith.constant 0 : i32
    %c0_i32_1 = arith.constant 0 : i32
    return %arg0, %c0_i32, %c0_i32_0 : i32, i32, i32
  }
}

</mosaic_0001>

<llo_original>
// kernel: tpu_custom_call.1
$region0: #{tpu_custom_call.1}
  #allocation0 [shape = 'u32[]', space=smem, size = 0x4, offset = 0x4, fixed_abs, tag = 'smem constant byte address 0x4 - core index']
  #allocation1 [shape = 'u32[144,128]{1,0:T(1,128)}', space=vmem, size = 0x12000, scoped, tag = 'internal scratch']
  %s0 = inlined_call_operand.hbm [shape: f32[2,8,130], index: 0, kind: input, shape index: {}]
  %s1 = inlined_call_operand.vmem [shape: f32[8,24], index: 1, kind: input, shape index: {}]
  %s2 = inlined_call_operand.vmem [shape: f32[8,1], index: 2, kind: input, shape index: {}]
  %s3 = inlined_call_operand.hbm [shape: f32[2,8,128], index: 3, kind: output, shape index: {}]
  %s4 = sld [smem:[#allocation0]]
  $region49: #{tpu_custom_call.1} parent=0
    _
  %s6 = ssub.s32 1, %s4
  %s7 = scalar_select 0, %s6, %s4
  $region1: #{tpu_custom_call.1} parent=0
    #allocation2 [shape = 'u8[16384]{0}', space=vmem, size = 0x4000, scoped, tag = 'input window, operand 0']
    #allocation3 [shape = 's32[2]{0}', space=sflag, size = 0x8, scoped, tag = 'scoped memory for tpu_custom_call.1']
    #allocation4 [shape = 's32[2]{0}', space=sflag, size = 0x8, scoped, tag = 'scoped memory for tpu_custom_call.1']
    #allocation5 [shape = 'u8[8192]{0}', space=vmem, size = 0x2000, scoped, tag = 'output window, operand 0']
    %8 = vsyncpa [#allocation3], 0
    %s9 = scalar_lea.sflag [#allocation3], 1
    %10 = vsyncpa %s9, 0
    %11 = vsyncpa [#allocation4], 0
    %s12 = scalar_lea.sflag [#allocation4], 1
    %13 = vsyncpa %s12, 0
    loop: start=0, step=1, limit=4
    $region2: #{tpu_custom_call.1} parent=1 // loop_pre_header
      _
    $region3: #{tpu_custom_call.1} parent=1 // loop_header
      %s15 = sphi 0, %s19
      %p16 = scmp.ge.s32.totalorder %s15, 4
      %s25 = sphi 0, %s27
      %s28 = sphi 0, %s25
      %s29 = sphi 0, %s28
      %s45 = sphi 0, %s29
      %s49 = sphi 0, %s49
      %s51 = sphi 0, %s49
      %s52 = sphi 0, %s51
      %s66 = sphi 0, %s52
      %s70 = sphi 0, %s70
      %s72 = sphi 0, %s70
      %s73 = sphi 0, %s72
      %s87 = sphi 0, %s73
      %s93 = sphi 0, %s95
      %s96 = sphi 0, %s93
      %s97 = sphi 0, %s96
      %s113 = sphi 0, %s97
    $region4: #{tpu_custom_call.1} parent=1 // loop_header_branch
      %18 = sbr.rel (%p16) target = $region8
    $region5: #{tpu_custom_call.1} parent=1 // loop_body
      %s20 = ssub.s32 %s15, 1
      %s21 = ssub.s32 %s15, 2
      %s22 = sadd.s32 %s15, 1
      %s23 = ssub.s32 %s15, %s22
      %p24 = scmp.eq.s32.totalorder %s23, 0
      %s26 = sadd.s32 %s25, 1
      %s27 = scalar_select %p24, %s25, %s26
      %p30 = pneg %p24
      %p31 = scmp.eq.s32.totalorder %s15, 1
      %p32 = por %p30, %p31
      %p33 = scmp.ne.s32.totalorder %s25, %s28
      %p34 = scmp.eq.s32.totalorder %s15, 0
      %p35 = por %p33, %p34
      %p36 = scmp.ne.s32.totalorder %s25, %s28
      %p37 = scmp.eq.s32.totalorder %s20, 1
      %p38 = por %p36, %p37
      %p39 = scmp.ne.s32.totalorder %s28, %s29
      %p40 = scmp.eq.s32.totalorder %s20, 0
      %p41 = por %p39, %p40
      %p42 = scmp.ne.s32.totalorder %s28, %s29
      %p43 = scmp.eq.s32.totalorder %s21, 1
      %p44 = por %p42, %p43
      %p46 = scmp.ne.s32.totalorder %s29, %s45
      %p47 = scmp.eq.s32.totalorder %s21, 0
      %p48 = por %p46, %p47
      %s50 = sadd.s32 %s49, 1
      %p53 = scmp.eq.s32.totalorder %s15, 1
      %p54 = scmp.ne.s32.totalorder %s49, %s51
      %p55 = scmp.eq.s32.totalorder %s15, 0
      %p56 = por %p54, %p55
      %p57 = scmp.ne.s32.totalorder %s49, %s51
      %p58 = scmp.eq.s32.totalorder %s20, 1
      %p59 = por %p57, %p58
      %p60 = scmp.ne.s32.totalorder %s51, %s52
      %p61 = scmp.eq.s32.totalorder %s20, 0
      %p62 = por %p60, %p61
      %p63 = scmp.ne.s32.totalorder %s51, %s52
      %p64 = scmp.eq.s32.totalorder %s21, 1
      %p65 = por %p63, %p64
      %p67 = scmp.ne.s32.totalorder %s52, %s66
      %p68 = scmp.eq.s32.totalorder %s21, 0
      %p69 = por %p67, %p68
      %s71 = sadd.s32 %s70, 1
      %p74 = scmp.eq.s32.totalorder %s15, 1
      %p75 = scmp.ne.s32.totalorder %s70, %s72
      %p76 = scmp.eq.s32.totalorder %s15, 0
      %p77 = por %p75, %p76
      %p78 = scmp.ne.s32.totalorder %s70, %s72
      %p79 = scmp.eq.s32.totalorder %s20, 1
      %p80 = por %p78, %p79
      %p81 = scmp.ne.s32.totalorder %s72, %s73
      %p82 = scmp.eq.s32.totalorder %s20, 0
      %p83 = por %p81, %p82
      %p84 = scmp.ne.s32.totalorder %s72, %s73
      %p85 = scmp.eq.s32.totalorder %s21, 1
      %p86 = por %p84, %p85
      %p88 = scmp.ne.s32.totalorder %s73, %s87
      %p89 = scmp.eq.s32.totalorder %s21, 0
      %p90 = por %p88, %p89
      %s91 = ssub.s32 %s15, %s22
      %p92 = scmp.eq.s32.totalorder %s91, 0
      %s94 = sadd.s32 %s93, 1
      %s95 = scalar_select %p92, %s93, %s94
      %p98 = pneg %p92
      %p99 = scmp.eq.s32.totalorder %s15, 1
      %p100 = por %p98, %p99
      %p101 = scmp.ne.s32.totalorder %s93, %s96
      %p102 = scmp.eq.s32.totalorder %s15, 0
      %p103 = por %p101, %p102
      %p104 = scmp.ne.s32.totalorder %s93, %s96
      %p105 = scmp.eq.s32.totalorder %s20, 1
      %p106 = por %p104, %p105
      %p107 = scmp.ne.s32.totalorder %s96, %s97
      %p108 = scmp.eq.s32.totalorder %s20, 0
      %p109 = por %p107, %p108
      %p110 = scmp.ne.s32.totalorder %s96, %s97
      %p111 = scmp.eq.s32.totalorder %s21, 1
      %p112 = por %p110, %p111
      %p114 = scmp.ne.s32.totalorder %s97, %s113
      %p115 = scmp.eq.s32.totalorder %s21, 0
      %p116 = por %p114, %p115
      %p117 = scmp.le.s32.totalorder 1, %s15
      %p118 = scmp.lt.s32.totalorder %s15, 3
      %p119 = pnand %p117, %p118
      %p120 = pneg %p119
      // Predicated region
      $region9: #{tpu_custom_call.1} parent=5 // pred_check
        _
      $region10: #{tpu_custom_call.1} parent=5 // pred_check_branch
        %122 = sbr.rel (%p119) target = $region12
      $region11: #{tpu_custom_call.1} parent=5 // pred_region
        %s123 = ssub.s32 %s15, 1
        // Predicated region
        $region13: #{tpu_custom_call.1} parent=11 // pred_check
          %p124 = pneg %p62
        $region14: #{tpu_custom_call.1} parent=11 // pred_check_branch
          %126 = sbr.rel (%p124) target = $region16
        $region15: #{tpu_custom_call.1} parent=11 // pred_region
          _
        $region16: #{tpu_custom_call.1} parent=11 // pred_fallthru
          _
        // Predicated region
        $region17: #{tpu_custom_call.1} parent=11 // pred_check
          %p127 = pneg %p83
        $region18: #{tpu_custom_call.1} parent=11 // pred_check_branch
          %129 = sbr.rel (%p127) target = $region20
        $region19: #{tpu_custom_call.1} parent=11 // pred_region
          _
        $region20: #{tpu_custom_call.1} parent=11 // pred_fallthru
          _
      $region12: #{tpu_custom_call.1} parent=5 // pred_fallthru
        _
      %p130 = scmp.lt.s32.totalorder %s15, 2
      // Predicated region
      $region21: #{tpu_custom_call.1} parent=5 // pred_check
        %p131 = pneg %p130
      $region22: #{tpu_custom_call.1} parent=5 // pred_check_branch
        %133 = sbr.rel (%p131) target = $region24
      $region23: #{tpu_custom_call.1} parent=5 // pred_region
        // Predicated region
        $region25: #{tpu_custom_call.1} parent=23 // pred_check
          %p134 = pneg %p35
        $region26: #{tpu_custom_call.1} parent=23 // pred_check_branch
          %136 = sbr.rel (%p134) target = $region28
        $region27: #{tpu_custom_call.1} parent=23 // pred_region
          %s137 = sand.u32 %s25, 1
          %s138 = scalar_lea.sflag [#allocation3], %s137
          %s139 = sand.u32 %s25, 1
          %s140 = smul.addr %s139, 16
          %s141 = scalar_lea.vmem [#allocation2], %s140
          %s143 = ssub.s32 256, 256
          %144 = vsyncadd %s138, %s143
          %s145 = smul.addr %s15, 2
          %s146 = smul.addr %s145, 128
          %s147 = scalar_lea.hbm %s0, %s146
          %s149 = sshll.u32 %s141, 4
          %s150 = int_to_ptr.vmem [resolvable:$true] %s149
          %152 = dma.hbm_to_vmem [thread:$0]  %s147, 256, %s150, %s138
        $region28: #{tpu_custom_call.1} parent=23 // pred_fallthru
          _
      $region24: #{tpu_custom_call.1} parent=5 // pred_fallthru
        _
      %p153 = scmp.le.s32.totalorder 1, %s15
      %p154 = scmp.lt.s32.totalorder %s15, 3
      %p155 = pnand %p153, %p154
      %p156 = pneg %p155
      // Predicated region
      $region29: #{tpu_custom_call.1} parent=5 // pred_check
        _
      $region30: #{tpu_custom_call.1} parent=5 // pred_check_branch
        %158 = sbr.rel (%p155) target = $region32
      $region31: #{tpu_custom_call.1} parent=5 // pred_region
        %s159 = ssub.s32 %s15, 1
        %s160 = sand.u32 %s28, 1
        %s161 = scalar_lea.sflag [#allocation3], %s160
        %s162 = sand.u32 %s28, 1
        %s163 = smul.addr %s162, 16
        %s164 = scalar_lea.vmem [#allocation2], %s163
        // Predicated region
        $region33: #{tpu_custom_call.1} parent=31 // pred_check
          %p165 = pneg %p41
        $region34: #{tpu_custom_call.1} parent=31 // pred_check_branch
          %167 = sbr.rel (%p165) target = $region36
        $region35: #{tpu_custom_call.1} parent=31 // pred_region
          %168 = dma.done %s161, 256
        $region36: #{tpu_custom_call.1} parent=31 // pred_fallthru
          _
        %s169 = sand.u32 %s28, 1
        %s170 = scalar_lea.sflag [#allocation3], %s169
        %s171 = sand.u32 %s28, 1
        %s172 = smul.addr %s171, 16
        %s173 = scalar_lea.vmem [#allocation2], %s172
        %p174 = pneg %p41
        %p175 = pneg %p38
        %p176 = pneg %p62
        %p177 = pneg %p59
        %p178 = pneg %p83
        %p179 = pneg %p80
        %p180 = pneg %p109
        %p181 = pneg %p106
        %s182 = sand.u32 %s96, 1
        %s183 = scalar_lea.sflag [#allocation4], %s182
        %s184 = sand.u32 %s96, 1
        %s185 = smul.addr %s184, 8
        %s186 = scalar_lea.vmem [#allocation5], %s185
        %v188 = vld [vmem:[%s1] sm:$0xff]
        %v189 = vpack.c.bf16 %v188, %v188
        %v190 = vld [vmem:[%s2] sm:$0xff]
        %192 = vset.pattern.permute.xlu0 0
        %193 = vperm.xlu0 %192, %v190
        %v194 = vpop.permute.xlu0 %193
        %v196 = vld [vmem:[%s164] sm:$0xff]
        %v197 = vld [vmem:[%s164 + $0x8] sm:$0xff]
        %200 = vrot.lane.b32.xlu0 %v196, 127
        %v201 = vpop.permute.xlu0 %200
        %202 = vrot.lane.b32.xlu0 %v197, 127
        %v203 = vpop.permute.xlu0 %202
        %vm204 = vcmask 1039360
        %v205 = vsel %vm204, %v201, %v203
        %207 = vrot.lane.b32.xlu0 %v196, 126
        %v208 = vpop.permute.xlu0 %207
        %209 = vrot.lane.b32.xlu0 %v197, 126
        %v210 = vpop.permute.xlu0 %209
        %vm211 = vcmask 1031168
        %v212 = vsel %vm211, %v208, %v210
        %v214 = vpack.c.bf16 %v205, %v196
        %v215 = vpack.c.bf16 %v212, %v212
        %vm216 = vcmask 195584
        %v218 = vsel %vm216, %v189, 0
        %vm220 = vcmask 1043456
        %v222 = vsel %vm220, %v215, 0
        %224 = vmatprep.subr.bf16.mxu0 0
        %225 = vmatpush1.bf16.msra.mxu0 0
        %226 = vmatprep.subr.bf16.mxu0 0
        %227 = vmatpush1.bf16.msra.mxu0 0
        %228 = vmatprep.subr.bf16.mxu0 0
        %229 = vmatpush1.bf16.msra.mxu0 0
        %230 = vmatprep.subr.bf16.mxu0 0
        %231 = vmatpush1.bf16.msra.mxu0 0
        %232 = vmatprep.subr.bf16.mxu0 0
        %233 = vmatpush1.bf16.msra.mxu0 0
        %234 = vmatprep.subr.bf16.mxu0 0
        %235 = vmatpush1.bf16.msra.mxu0 0
        %236 = vmatprep.subr.bf16.mxu0 0
        %237 = vmatpush1.bf16.msra.mxu0 %v222
        %238 = vmatprep.subr.bf16.mxu0 0
        %239 = vmatpush1.bf16.msra.mxu0 %v214
        %240 = vmatprep.subr.bf16.mxu0 0
        %241 = vmatpush2.bf16.msra.mxu0 0
        %242 = vmatprep.subr.bf16.mxu0 0
        %243 = vmatpush2.bf16.msra.mxu0 0
        %244 = vmatprep.subr.bf16.mxu0 0
        %245 = vmatpush2.bf16.msra.mxu0 0
        %246 = vmatprep.subr.bf16.mxu0 0
        %247 = vmatpush2.bf16.msra.mxu0 0
        %248 = vmatprep.subr.bf16.mxu0 0
        %249 = vmatpush2.bf16.msra.mxu0 0
        %250 = vmatprep.subr.bf16.mxu0 0
        %251 = vmatpush2.bf16.msra.mxu0 0
        %252 = vmatprep.subr.bf16.mxu0 0
        %253 = vmatpush2.bf16.msra.mxu0 0
        %254 = vmatprep.subr.bf16.mxu0 0
        %255 = vmatpush2.bf16.msra.mxu0 0
        %256 = vmatprep.mubr.bf16.mxu0 0
        %257 = vmatmul.mubr.bf16.gmra.mxu0 %v218
        %v258 = vpop.f32.mrf.mxu0
        %v259 = vadd.f32 %v194, %v258
        %v260 = vpop.f32.mrf.mxu0
        %v261 = vpop.f32.mrf.mxu0
        %v262 = vpop.f32.mrf.mxu0
        %263 = vdwg.mxu0
        %v264 = vtanh.pop %v259
        %265 = vst [vmem:[%s186] sm:$0xff] %v264
        %s266 = sand.u32 %s96, 1
        %s267 = scalar_lea.sflag [#allocation4], %s266
        %s268 = sand.u32 %s96, 1
        %s269 = smul.addr %s268, 8
        %s270 = scalar_lea.vmem [#allocation5], %s269
        // Predicated region
        $region37: #{tpu_custom_call.1} parent=31 // pred_check
          %p271 = pneg %p106
        $region38: #{tpu_custom_call.1} parent=31 // pred_check_branch
          %273 = sbr.rel (%p271) target = $region40
        $region39: #{tpu_custom_call.1} parent=31 // pred_region
          %s275 = ssub.s32 128, 128
          %276 = vsyncadd %s267, %s275
          %s277 = smul.addr %s20, 128
          %s278 = scalar_lea.hbm %s3, %s277
          %s280 = sshll.u32 %s270, 4
          %s281 = int_to_ptr.vmem [resolvable:$true] %s280
          %283 = dma.vmem_to_hbm [thread:$0]  %s281, 128, %s278, %s267
        $region40: #{tpu_custom_call.1} parent=31 // pred_fallthru
          _
      $region32: #{tpu_custom_call.1} parent=5 // pred_fallthru
        _
      %p284 = scmp.le.s32.totalorder 2, %s15
      // Predicated region
      $region41: #{tpu_custom_call.1} parent=5 // pred_check
        %p285 = pneg %p284
      $region42: #{tpu_custom_call.1} parent=5 // pred_check_branch
        %287 = sbr.rel (%p285) target = $region44
      $region43: #{tpu_custom_call.1} parent=5 // pred_region
        %s288 = ssub.s32 %s15, 2
        // Predicated region
        $region45: #{tpu_custom_call.1} parent=43 // pred_check
          %p289 = pneg %p112
        $region46: #{tpu_custom_call.1} parent=43 // pred_check_branch
          %291 = sbr.rel (%p289) target = $region48
        $region47: #{tpu_custom_call.1} parent=43 // pred_region
          %s292 = sand.u32 %s97, 1
          %s293 = scalar_lea.sflag [#allocation4], %s292
          %s294 = sand.u32 %s97, 1
          %s295 = smul.addr %s294, 8
          %s296 = scalar_lea.vmem [#allocation5], %s295
          %297 = dma.done %s293, 128
        $region48: #{tpu_custom_call.1} parent=43 // pred_fallthru
          _
      $region44: #{tpu_custom_call.1} parent=5 // pred_fallthru
        _
    $region6: #{tpu_custom_call.1} parent=1 // loop_footer
      %s19 = sadd.s32 1, %s15
    $region7: #{tpu_custom_call.1} parent=1 // loop_footer_branch
      %14 = sbr.rel target = $region3
    $region8: #{tpu_custom_call.1} parent=1 // loop_exit
      _
    %298 = vsyncpa [#allocation3], 1
    %s299 = scalar_lea.sflag [#allocation3], 1
    %300 = vsyncpa %s299, 1
    %301 = vsyncpa [#allocation4], 1
    %s302 = scalar_lea.sflag [#allocation4], 1
    %303 = vsyncpa %s302, 1

</llo_original>
